<compile_context>
chip_gen: v5e
topology: v5e:2x2
jax: 0.10.0
libtpu: 0.0.40
codegen_flags: <defaults>
</compile_context>

<pallas_src>
import functools

import jax
import jax.numpy as jnp
from jax import lax
from jax.experimental import pallas as pl
from jax.experimental.pallas import tpu as pltpu

_LANE = 128


def _cdiv(a, b):
    return -(-a // b)


def _round_up(x, m):
    return _cdiv(x, m) * m


def _round_down(x, m):
    return (x // m) * m


def _tpu_defaults():
    """Returns (parallel TensorCores per device, target elements per input tile)."""
    kind = ""
    try:
        kind = jax.devices()[0].device_kind.lower()
    except Exception:
        pass
    n_cores = 2 if "v7" in kind else 1  # v7x: 2 TCs behind one device (megacore-style)
    # v5e scoped-VMEM default is 16 MiB -> 512Ki-element tiles (~9 MiB double
    # buffered incl. 1 B/token mask).  v6e / v7x default to 32 MiB -> 1 Mi elems.
    small_vmem = ("v5" in kind) or (not kind)
    return n_cores, ((1 << 19) if small_vmem else (1 << 20))


_N_CORES, _TARGET_TILE_ELEMS = _tpu_defaults()


def _kl_partials_kernel(lhs_ref, rhs_ref, mask_ref, num_ref, den_ref, *,
                        n_rows, n_cols, tile_b, tile_s, s_steps, needs_mask):
    s = pl.program_id(2)  # reduction ('arbitrary') axis

    @pl.when(s == 0)
    def _():
        num_ref[...] = jnp.zeros_like(num_ref)
        den_ref[...] = jnp.zeros_like(den_ref)

    # In-kernel upcast: inputs stay in their native dtype in HBM/VMEM.
    lhs = lhs_ref[...].astype(jnp.float32)
    rhs = rhs_ref[...].astype(jnp.float32)
    diff = rhs - lhs                              # VPU
    per_token_kl = jnp.exp(diff) - diff - 1.0     # EUP + VPU
    m = mask_ref[...].astype(jnp.float32)

    if needs_mask:
        # Ragged edge / phantom tiles: out-of-range bytes are undefined (can be
        # inf/NaN), so zero them robustly with a validity mask.  Only traced in
        # when shapes don't divide evenly; VPU has large slack (HBM-bound).
        b = pl.program_id(0)
        c = pl.program_id(1)
        row0 = b * tile_b
        col0 = (c * s_steps + s) * tile_s         # UNclamped global tile origin
        rows = lax.broadcasted_iota(jnp.int32, (tile_b, tile_s), 0) + row0
        cols = lax.broadcasted_iota(jnp.int32, (tile_b, tile_s), 1) + col0
        valid = (rows < n_rows) & (cols < n_cols)
        per_token_kl = jnp.where(valid, per_token_kl, 0.0)
        m = jnp.where(valid, m, 0.0)

    # NOTE: masked real tokens with inf kl give inf*0 = NaN -- this exactly
    # matches the PyTorch reference (kl computed before masked_mean).
    contrib = per_token_kl * m

    if tile_b % 8 == 0:
        # Fold sublane groups: major-dim split is layout-free, pure VPU adds
        # into the resident lane-dense accumulator.
        num_ref[...] += contrib.reshape(tile_b // 8, 8, tile_s).sum(axis=0)
        den_ref[...] += m.reshape(tile_b // 8, 8, tile_s).sum(axis=0)
    else:
        # Small / odd row tiles: one cheap cross-sublane reduce per step.
        num_ref[...] += contrib.sum(axis=0, keepdims=True)
        den_ref[...] += m.sum(axis=0, keepdims=True)


@functools.partial(jax.jit, static_argnames=("tile_elems", "num_chunks"))
def kl_penalty(lhs_logprobs, rhs_logprobs, padding_masks, coeff,
               *, tile_elems=None, num_chunks=None):
    """coeff * KL(lhs | rhs), masked-mean over padding_masks.  Returns scalar f32."""
    n_cols = lhs_logprobs.shape[-1] if lhs_logprobs.ndim >= 1 else 1
    # Collapse leading dims (layout-preserving, no data movement).
    lhs = lhs_logprobs.reshape(-1, n_cols)
    rhs = rhs_logprobs.reshape(-1, n_cols)
    mask = padding_masks.reshape(-1, n_cols)
    if mask.dtype == jnp.bool_:
        # TODO(synk): pass bool straight through once bool memrefs are verified
        # on all target Mosaic builds; int8 keeps the kernel stream at 1 B/token.
        mask = mask.astype(jnp.int8)
    n_rows = lhs.shape[0]

    target = int(tile_elems) if tile_elems is not None else _TARGET_TILE_ELEMS

    # ---- tiling -----------------------------------------------------------
    # Row (second-minor) tile: full extent when small, else a multiple of 32 so
    # f32/bf16/int8 sublane packing all stay aligned.
    max_tile_b = max(64, _round_down(max(target // _round_up(n_cols, _LANE), 1), 32))
    tile_b = n_rows if n_rows <= max_tile_b else max_tile_b
    b_tiles = _cdiv(n_rows, tile_b)

    # Column (lane) tile: full extent when it fits the budget, else a multiple
    # of 128 with a ragged (in-kernel masked) last tile.
    max_tile_s = max(_LANE, _round_down(max(target // tile_b, _LANE), _LANE))
    if n_cols <= max_tile_s:
        tile_s, s_tiles = n_cols, 1
    else:
        tile_s, s_tiles = max_tile_s, _cdiv(n_cols, max_tile_s)

    # Extra 'parallel' chunk axis along the sequence only where there are two
    # TensorCores to feed (v7x) and the row axis alone cannot feed them.
    if num_chunks is not None:
        s_chunks = max(1, min(int(num_chunks), s_tiles))
    elif _N_CORES > 1 and b_tiles < _N_CORES and s_tiles >= _N_CORES:
        s_chunks = _N_CORES
    else:
        s_chunks = 1
    s_steps = _cdiv(s_tiles, s_chunks)

    needs_mask = (b_tiles * tile_b > n_rows) or (s_chunks * s_steps * tile_s > n_cols)
    acc_r = 8 if tile_b % 8 == 0 else 1

    def in_map(b, c, s):
        # Clamp phantom round-up tiles back in-bounds; their contribution is
        # zeroed by the in-kernel validity mask.
        return (b, jnp.minimum(c * s_steps + s, s_tiles - 1))

    out_map = lambda b, c, s: (b, c, 0, 0)   # resident across the reduction axis

    kernel = functools.partial(
        _kl_partials_kernel,
        n_rows=n_rows, n_cols=n_cols, tile_b=tile_b, tile_s=tile_s,
        s_steps=s_steps, needs_mask=needs_mask)

    num_p, den_p = pl.pallas_call(
        kernel,
        out_shape=(
            jax.ShapeDtypeStruct((b_tiles, s_chunks, acc_r, tile_s), jnp.float32),
            jax.ShapeDtypeStruct((b_tiles, s_chunks, acc_r, tile_s), jnp.float32),
        ),
        grid=(b_tiles, s_chunks, s_steps),
        in_specs=[
            pl.BlockSpec((tile_b, tile_s), in_map),
            pl.BlockSpec((tile_b, tile_s), in_map),
            pl.BlockSpec((tile_b, tile_s), in_map),
        ],
        out_specs=(
            pl.BlockSpec((None, None, acc_r, tile_s), out_map),
            pl.BlockSpec((None, None, acc_r, tile_s), out_map),
        ),
        compiler_params=pltpu.CompilerParams(
            dimension_semantics=("parallel", "parallel", "arbitrary"),
        ),
    )(lhs, rhs, mask)

    total_num = jnp.sum(num_p)
    total_den = jnp.sum(den_p)
    # sum(mask)==0 yields inf/NaN, exactly matching the PyTorch masked_mean
    # reference -- intentionally not clamped.
    return coeff * total_num / total_den


def kl_penalty_ref(lhs, rhs, mask, coeff):
    diff = rhs.astype(jnp.float32) - lhs.astype(jnp.float32)
    per_token_kl = jnp.exp(diff) - diff - 1.0
    m = mask.astype(jnp.float32)
    return coeff * jnp.sum(per_token_kl * m) / jnp.sum(m)


if __name__ == "__main__":
    coeff = 0.1   # KLPenalty.__init__(coeff)  (deterministic, in-script)

    key = jax.random.PRNGKey(0)
    k1, k2, k3, k4, k5, k6 = jax.random.split(key, 6)

    # --- Case 1: f32 logprobs, boolean padding mask, evenly dividing shapes --
    B, S = 4, 256
    lhs1 = -jnp.abs(jax.random.normal(k1, (B, S), dtype=jnp.float32)) - 0.1
    rhs1 = lhs1 + 0.2 * jax.random.normal(k2, (B, S), dtype=jnp.float32)
    mask1 = jax.random.bernoulli(k3, p=0.8, shape=(B, S))

    out1 = jax.block_until_ready(kl_penalty(lhs1, rhs1, mask1, coeff))
    ref1 = kl_penalty_ref(lhs1, rhs1, mask1, coeff)
    assert jnp.allclose(out1, ref1, rtol=1e-4, atol=1e-6), (out1, ref1)

    # --- Case 2: bf16 logprobs (native-dtype stream), f32 mask, ragged tiles
    #     + forced 2-chunk parallel axis (exercises clamp/phantom-tile masking).
    B2, S2 = 5, 1000
    base = -jnp.abs(jax.random.normal(k4, (B2, S2), dtype=jnp.float32)) - 0.1
    lhs2 = base.astype(jnp.bfloat16)
    rhs2 = (base + 0.2 * jax.random.normal(k5, (B2, S2), dtype=jnp.float32)
            ).astype(jnp.bfloat16)
    mask2 = jax.random.bernoulli(k6, p=0.8, shape=(B2, S2)).astype(jnp.float32)

    out2 = jax.block_until_ready(
        kl_penalty(lhs2, rhs2, mask2, coeff, tile_elems=2048, num_chunks=2))
    ref2 = kl_penalty_ref(lhs2, rhs2, mask2, coeff)
    assert jnp.allclose(out2, ref2, rtol=1e-3, atol=1e-5), (out2, ref2)

    # TODO(synk): logger.collect('kl_penalty', ...) is host-side wandb logging; no kernel equivalent.
    print("KERNEL_OK")
</pallas_src>

<mosaic_0001>
module attributes {stable_mosaic.version = 11 : i64} {
  func.func @_kl_partials_kernel(%arg0: i32, %arg1: i32, %arg2: i32, %arg3: memref<4x256xf32, #tpu.memory_space<vmem>>, %arg4: memref<4x256xf32, #tpu.memory_space<vmem>>, %arg5: memref<4x256xi8, #tpu.memory_space<vmem>>, %arg6: memref<1x1x1x256xf32, #tpu.memory_space<vmem>>, %arg7: memref<1x1x1x256xf32, #tpu.memory_space<vmem>>) attributes {dimension_semantics = [#tpu.dimension_semantics<parallel>, #tpu.dimension_semantics<parallel>, #tpu.dimension_semantics<arbitrary>], iteration_bounds = array<i64: 1, 1, 1>, scalar_prefetch = 0 : i64, scratch_operands = 0 : i64, tpu.core_type = #tpu.core_type<tc>, window_params = [{transform_indices = @transform_0, window_bounds = array<i64: 4, 256>}, {transform_indices = @transform_1, window_bounds = array<i64: 4, 256>}, {transform_indices = @transform_2, window_bounds = array<i64: 4, 256>}, {transform_indices = @transform_3, window_bounds = array<i64: 1, 1, 1, 256>}, {transform_indices = @transform_4, window_bounds = array<i64: 1, 1, 1, 256>}]} {
    %c0_i32 = arith.constant 0 : i32
    %0 = arith.cmpi eq, %arg2, %c0_i32 : i32
    %1 = arith.extui %0 : i1 to i32
    %c0_i32_0 = arith.constant 0 : i32
    %2 = arith.cmpi ne, %1, %c0_i32_0 : i32
    scf.if %2 {
      %cst_24 = arith.constant 0.000000e+00 : f32
      %29 = vector.broadcast %cst_24 : f32 to vector<1x256xf32>
      %c0_25 = arith.constant 0 : index
      %c0_26 = arith.constant 0 : index
      %c0_27 = arith.constant 0 : index
      %c0_28 = arith.constant 0 : index
      %30 = vector.load %arg6[%c0_25, %c0_26, %c0_27, %c0_28] : memref<1x1x1x256xf32, #tpu.memory_space<vmem>>, vector<1x1x1x256xf32>
      %31 = vector.shape_cast %30 : vector<1x1x1x256xf32> to vector<1x256xf32>
      %32 = vector.shape_cast %29 : vector<1x256xf32> to vector<1x1x1x256xf32>
      tpu.vector_store %arg6[%c0_25, %c0_26, %c0_27, %c0_28], %32 {strides = array<i32>} : memref<1x1x1x256xf32, #tpu.memory_space<vmem>>, vector<1x1x1x256xf32>,
      %cst_29 = arith.constant 0.000000e+00 : f32
      %33 = vector.broadcast %cst_29 : f32 to vector<1x256xf32>
      %c0_30 = arith.constant 0 : index
      %c0_31 = arith.constant 0 : index
      %c0_32 = arith.constant 0 : index
      %c0_33 = arith.constant 0 : index
      %34 = vector.load %arg7[%c0_30, %c0_31, %c0_32, %c0_33] : memref<1x1x1x256xf32, #tpu.memory_space<vmem>>, vector<1x1x1x256xf32>
      %35 = vector.shape_cast %34 : vector<1x1x1x256xf32> to vector<1x256xf32>
      %36 = vector.shape_cast %33 : vector<1x256xf32> to vector<1x1x1x256xf32>
      tpu.vector_store %arg7[%c0_30, %c0_31, %c0_32, %c0_33], %36 {strides = array<i32>} : memref<1x1x1x256xf32, #tpu.memory_space<vmem>>, vector<1x1x1x256xf32>,
    } else {
    }
    %c0 = arith.constant 0 : index
    %c0_1 = arith.constant 0 : index
    %3 = vector.load %arg3[%c0, %c0_1] : memref<4x256xf32, #tpu.memory_space<vmem>>, vector<4x256xf32>
    %c0_2 = arith.constant 0 : index
    %c0_3 = arith.constant 0 : index
    %4 = vector.load %arg4[%c0_2, %c0_3] : memref<4x256xf32, #tpu.memory_space<vmem>>, vector<4x256xf32>
    %5 = arith.subf %4, %3 : vector<4x256xf32>
    %6 = math.exp %5 : vector<4x256xf32>
    %7 = arith.subf %6, %5 : vector<4x256xf32>
    %cst = arith.constant 1.000000e+00 : f32
    %8 = vector.broadcast %cst : f32 to vector<4x256xf32>
    %9 = arith.subf %7, %8 : vector<4x256xf32>
    %c0_4 = arith.constant 0 : index
    %c0_5 = arith.constant 0 : index
    %10 = vector.load %arg5[%c0_4, %c0_5] : memref<4x256xi8, #tpu.memory_space<vmem>>, vector<4x256xi8>
    %11 = arith.sitofp %10 : vector<4x256xi8> to vector<4x256xf32>
    %12 = arith.mulf %9, %11 : vector<4x256xf32>
    %c0_6 = arith.constant 0 : index
    %c0_7 = arith.constant 0 : index
    %c0_8 = arith.constant 0 : index
    %c0_9 = arith.constant 0 : index
    %13 = vector.load %arg6[%c0_6, %c0_7, %c0_8, %c0_9] : memref<1x1x1x256xf32, #tpu.memory_space<vmem>>, vector<1x1x1x256xf32>
    %14 = vector.shape_cast %13 : vector<1x1x1x256xf32> to vector<1x256xf32>
    %cst_10 = arith.constant dense<0.000000e+00> : vector<256xf32>
    %15 = vector.multi_reduction <add>, %12, %cst_10 [0] : vector<4x256xf32> to vector<256xf32>
    %16 = vector.shape_cast %15 : vector<256xf32> to vector<1x256xf32>
    %17 = arith.addf %14, %16 : vector<1x256xf32>
    %c0_11 = arith.constant 0 : index
    %c0_12 = arith.constant 0 : index
    %c0_13 = arith.constant 0 : index
    %c0_14 = arith.constant 0 : index
    %18 = vector.load %arg6[%c0_11, %c0_12, %c0_13, %c0_14] : memref<1x1x1x256xf32, #tpu.memory_space<vmem>>, vector<1x1x1x256xf32>
    %19 = vector.shape_cast %18 : vector<1x1x1x256xf32> to vector<1x256xf32>
    %20 = vector.shape_cast %17 : vector<1x256xf32> to vector<1x1x1x256xf32>
    tpu.vector_store %arg6[%c0_11, %c0_12, %c0_13, %c0_14], %20 {strides = array<i32>} : memref<1x1x1x256xf32, #tpu.memory_space<vmem>>, vector<1x1x1x256xf32>,
    %c0_15 = arith.constant 0 : index
    %c0_16 = arith.constant 0 : index
    %c0_17 = arith.constant 0 : index
    %c0_18 = arith.constant 0 : index
    %21 = vector.load %arg7[%c0_15, %c0_16, %c0_17, %c0_18] : memref<1x1x1x256xf32, #tpu.memory_space<vmem>>, vector<1x1x1x256xf32>
    %22 = vector.shape_cast %21 : vector<1x1x1x256xf32> to vector<1x256xf32>
    %cst_19 = arith.constant dense<0.000000e+00> : vector<256xf32>
    %23 = vector.multi_reduction <add>, %11, %cst_19 [0] : vector<4x256xf32> to vector<256xf32>
    %24 = vector.shape_cast %23 : vector<256xf32> to vector<1x256xf32>
    %25 = arith.addf %22, %24 : vector<1x256xf32>
    %c0_20 = arith.constant 0 : index
    %c0_21 = arith.constant 0 : index
    %c0_22 = arith.constant 0 : index
    %c0_23 = arith.constant 0 : index
    %26 = vector.load %arg7[%c0_20, %c0_21, %c0_22, %c0_23] : memref<1x1x1x256xf32, #tpu.memory_space<vmem>>, vector<1x1x1x256xf32>
    %27 = vector.shape_cast %26 : vector<1x1x1x256xf32> to vector<1x256xf32>
    %28 = vector.shape_cast %25 : vector<1x256xf32> to vector<1x1x1x256xf32>
    tpu.vector_store %arg7[%c0_20, %c0_21, %c0_22, %c0_23], %28 {strides = array<i32>} : memref<1x1x1x256xf32, #tpu.memory_space<vmem>>, vector<1x1x1x256xf32>,
    return
  }
  func.func @transform_0(%arg0: i32, %arg1: i32, %arg2: i32) -> (i32, i32) {
    %c1_i32 = arith.constant 1 : i32
    %0 = arith.muli %arg1, %c1_i32 : i32
    %1 = arith.addi %0, %arg2 : i32
    %c0_i32 = arith.constant 0 : i32
    %2 = arith.minsi %1, %c0_i32 : i32
    %c0_i32_0 = arith.constant 0 : i32
    return %arg0, %2 : i32, i32
  }
  func.func @transform_1(%arg0: i32, %arg1: i32, %arg2: i32) -> (i32, i32) {
    %c1_i32 = arith.constant 1 : i32
    %0 = arith.muli %arg1, %c1_i32 : i32
    %1 = arith.addi %0, %arg2 : i32
    %c0_i32 = arith.constant 0 : i32
    %2 = arith.minsi %1, %c0_i32 : i32
    %c0_i32_0 = arith.constant 0 : i32
    return %arg0, %2 : i32, i32
  }
  func.func @transform_2(%arg0: i32, %arg1: i32, %arg2: i32) -> (i32, i32) {
    %c1_i32 = arith.constant 1 : i32
    %0 = arith.muli %arg1, %c1_i32 : i32
    %1 = arith.addi %0, %arg2 : i32
    %c0_i32 = arith.constant 0 : i32
    %2 = arith.minsi %1, %c0_i32 : i32
    %c0_i32_0 = arith.constant 0 : i32
    return %arg0, %2 : i32, i32
  }
  func.func @transform_3(%arg0: i32, %arg1: i32, %arg2: i32) -> (i32, i32, i32, i32) {
    %c0_i32 = arith.constant 0 : i32
    %c0_i32_0 = arith.constant 0 : i32
    %c0_i32_1 = arith.constant 0 : i32
    return %arg0, %arg1, %c0_i32, %c0_i32_0 : i32, i32, i32, i32
  }
  func.func @transform_4(%arg0: i32, %arg1: i32, %arg2: i32) -> (i32, i32, i32, i32) {
    %c0_i32 = arith.constant 0 : i32
    %c0_i32_0 = arith.constant 0 : i32
    %c0_i32_1 = arith.constant 0 : i32
    return %arg0, %arg1, %c0_i32, %c0_i32_0 : i32, i32, i32, i32
  }
}

</mosaic_0001>

<llo_original>
// kernel: kl_penalty.1
$region0: #{kl_penalty.1}
  #allocation0 [shape = 'u32[]', space=smem, size = 0x4, offset = 0x4, fixed_abs, tag = 'smem constant byte address 0x4 - core index']
  #allocation1 [shape = 'u32[72,128]{1,0:T(1,128)}', space=vmem, size = 0x9000, scoped, tag = 'internal scratch']
  %s0 = inlined_call_operand.hbm [shape: f32[4,256], index: 0, kind: input, shape index: {}]
  %s1 = inlined_call_operand.hbm [shape: f32[4,256], index: 1, kind: input, shape index: {}]
  %s2 = inlined_call_operand.vmem [shape: s8[4,256], index: 2, kind: input, shape index: {}]
  %s3 = inlined_call_operand.vmem [shape: f32[1,1,1,256], index: 3, kind: output, shape index: {0}]
  %s4 = inlined_call_operand.vmem [shape: f32[1,1,1,256], index: 4, kind: output, shape index: {1}]
  %5 = xla_tuple %s3, %s4
  %s6 = sld [smem:[#allocation0]]
  $region42: #{kl_penalty.1} parent=0
    _
  %s8 = ssub.s32 1, %s6
  %s9 = scalar_select 0, %s8, %s6
  $region1: #{kl_penalty.1} parent=0
    #allocation2 [shape = 'u8[4096]{0}', space=vmem, size = 0x1000, scoped, tag = 'input window, operand 0, single buffered']
    #allocation3 [shape = 's32[1]{0}', space=sflag, size = 0x4, scoped, tag = 'scoped memory for kl_penalty.1']
    #allocation4 [shape = 'u8[4096]{0}', space=vmem, size = 0x1000, scoped, tag = 'input window, operand 1, single buffered']
    #allocation5 [shape = 's32[1]{0}', space=sflag, size = 0x4, scoped, tag = 'scoped memory for kl_penalty.1']
    %10 = vsyncpa [#allocation3], 0
    %11 = vsyncpa [#allocation5], 0
    // Predicated region
    $region2: #{kl_penalty.1} parent=1 // pred_check
      _
    $region3: #{kl_penalty.1} parent=1 // pred_check_branch
      %13 = sbr.rel (0) target = $region5
    $region4: #{kl_penalty.1} parent=1 // pred_region
      %s14 = sadd.s32 0, 0
      %p15 = scmp.lt.s32.totalorder %s14, 0
      %s16 = scalar_select %p15, %s14, 0
      %s17 = smul.u32 2, %s16
      %19 = vsyncadd [#allocation3], 0
      %s20 = smul.addr %s17, 4
      %s21 = scalar_lea.hbm %s0, %s20
      %s23 = sshll.u32 %s21, 4
      %s24 = int_to_ptr.hbm [resolvable:$true] %s23
      %s25 = sshll.u32 [#allocation2], 4
      %s26 = int_to_ptr.vmem [resolvable:$true] %s25
      %28 = dma.hbm_to_vmem [thread:$0]  %s24, 128, %s26, [#allocation3]
    $region5: #{kl_penalty.1} parent=1 // pred_fallthru
      _
    // Predicated region
    $region6: #{kl_penalty.1} parent=1 // pred_check
      _
    $region7: #{kl_penalty.1} parent=1 // pred_check_branch
      %30 = sbr.rel (0) target = $region9
    $region8: #{kl_penalty.1} parent=1 // pred_region
      %s31 = sadd.s32 0, 0
      %p32 = scmp.lt.s32.totalorder %s31, 0
      %s33 = scalar_select %p32, %s31, 0
      %s34 = smul.u32 2, %s33
      %36 = vsyncadd [#allocation5], 0
      %s37 = smul.addr %s34, 4
      %s38 = scalar_lea.hbm %s1, %s37
      %s40 = sshll.u32 %s38, 4
      %s41 = int_to_ptr.hbm [resolvable:$true] %s40
      %s42 = sshll.u32 [#allocation4], 4
      %s43 = int_to_ptr.vmem [resolvable:$true] %s42
      %45 = dma.hbm_to_vmem [thread:$0]  %s41, 128, %s43, [#allocation5]
    $region9: #{kl_penalty.1} parent=1 // pred_fallthru
      _
    // Predicated region
    $region10: #{kl_penalty.1} parent=1 // pred_check
      _
    $region11: #{kl_penalty.1} parent=1 // pred_check_branch
      %47 = sbr.rel (0) target = $region13
    $region12: #{kl_penalty.1} parent=1 // pred_region
      %s48 = sadd.s32 0, 0
      %p49 = scmp.lt.s32.totalorder %s48, 0
      %s50 = scalar_select %p49, %s48, 0
      %s51 = smul.u32 2, %s50
      %p52 = scmp.lt.s32.totalorder %s51, 1
      %s53 = scalar_select %p52, %s51, 1
      %s54 = scalar_lea.vmem %s2, %s53
      %s55 = sadd.s32 0, 0
      %p56 = scmp.lt.s32.totalorder %s55, 0
      %s57 = scalar_select %p56, %s55, 0
      %s58 = smul.u32 2, %s57
    $region13: #{kl_penalty.1} parent=1 // pred_fallthru
      _
    // Predicated region
    $region14: #{kl_penalty.1} parent=1 // pred_check
      _
    $region15: #{kl_penalty.1} parent=1 // pred_check_branch
      %60 = sbr.rel (0) target = $region17
    $region16: #{kl_penalty.1} parent=1 // pred_region
      %62 = dma.done [#allocation3], 128
    $region17: #{kl_penalty.1} parent=1 // pred_fallthru
      _
    // Predicated region
    $region18: #{kl_penalty.1} parent=1 // pred_check
      _
    $region19: #{kl_penalty.1} parent=1 // pred_check_branch
      %64 = sbr.rel (0) target = $region21
    $region20: #{kl_penalty.1} parent=1 // pred_region
      %66 = dma.done [#allocation5], 128
    $region21: #{kl_penalty.1} parent=1 // pred_fallthru
      _
    %s67 = sadd.s32 0, 0
    %p68 = scmp.lt.s32.totalorder %s67, 0
    %s69 = scalar_select %p68, %s67, 0
    %s70 = smul.u32 2, %s69
    %p71 = scmp.lt.s32.totalorder %s70, 1
    %s72 = scalar_select %p71, %s70, 1
    %s73 = scalar_lea.vmem %s2, %s72
    %s74 = sadd.s32 0, 0
    %p75 = scmp.lt.s32.totalorder %s74, 0
    %s76 = scalar_select %p75, %s74, 0
    %s77 = smul.u32 2, %s76
    %s78 = sadd.s32 0, 0
    %p79 = scmp.lt.s32.totalorder %s78, 0
    %s80 = scalar_select %p79, %s78, 0
    %s81 = smul.u32 2, %s80
    %s82 = sadd.s32 0, 0
    %p83 = scmp.lt.s32.totalorder %s82, 0
    %s84 = scalar_select %p83, %s82, 0
    %s85 = smul.u32 2, %s84
    %p86 = scmp.lt.s32.totalorder %s85, 1
    %s87 = scalar_select %p86, %s85, 1
    %s88 = scalar_lea.vmem %s2, %s87
    %s89 = sadd.s32 0, 0
    %p90 = scmp.lt.s32.totalorder %s89, 0
    %s91 = scalar_select %p90, %s89, 0
    %s92 = smul.u32 2, %s91
    %p93 = scmp.eq.s32.totalorder 0, 0
    // Predicated region
    $region22: #{kl_penalty.1} parent=1 // pred_check
      %p94 = pneg %p93
    $region23: #{kl_penalty.1} parent=1 // pred_check_branch
      %96 = sbr.rel (%p94) target = $region25
    $region24: #{kl_penalty.1} parent=1 // pred_region
      %v97 = vlaneseq
      %vm98 = vcmp.ge.s32.totalorder %v97, 0
      %vm99 = vcmp.lt.s32.totalorder %v97, 256
      %vm100 = vmand %vm98, %vm99
      %101 = vst.msk [vmem:[%s3] sm:$0x3] %vm100, 0.0
      %102 = vst.msk [vmem:[%s4] sm:$0x3] %vm100, 0.0
    $region25: #{kl_penalty.1} parent=1 // pred_fallthru
      _
    %v103 = vld [vmem:[#allocation2] sm:$0xff]
    %v104 = vld [vmem:[#allocation4] sm:$0xff]
    %v105 = vsub.f32 %v104, %v103
    %v106 = vmul.f32 %v105, 1.442695
    %v107 = vpow.pop %v106
    %v108 = vsub.f32 %v107, %v105
    %v109 = vsub.f32 %v108, 1.0
    %v110 = vld [vmem:[%s88] sm:$0x3]
    %v111 = vunpack.c.0.s8 %v110
    %v112 = vcvt.s32.f32 %v111
    %v113 = vmul.f32 %v109, %v112
    %v114 = vld [vmem:[%s3] sm:$0x3]
    %116 = vst [vmem:[#allocation1] ss:$2 sm:$0xff] %v113
    %v117 = vld.sshfl [vmem:[#allocation1] sm:$0xff pattern:$0x75316420]
    %v118 = vld.sshfl [vmem:[#allocation1 + $0x8] sm:$0xff pattern:$0x75316420]
    %vm121 = vcmask 1043456
    %v122 = vsel %vm121, %v117, 0.0
    %v123 = vrot.slane %v122, 4
    %v124 = vadd.f32 %v122, %v123
    %v125 = vrot.slane %v124, 2
    %v126 = vadd.f32 %v124, %v125
    %v127 = vrot.slane %v126, 1
    %v128 = vadd.f32 %v126, %v127
    %v129 = vsel %vm121, %v118, 0.0
    %v130 = vrot.slane %v129, 4
    %v131 = vadd.f32 %v129, %v130
    %v132 = vrot.slane %v131, 2
    %v133 = vadd.f32 %v131, %v132
    %v134 = vrot.slane %v133, 1
    %v135 = vadd.f32 %v133, %v134
    %v138 = vrot.slane %v135, 7
    %vm139 = vcmask 1040384
    %v140 = vsel %vm139, %v128, %v138
    %v142 = vadd.f32 %v114, %v140
    %v143 = vlaneseq
    %vm144 = vcmp.ge.s32.totalorder %v143, 0
    %vm145 = vcmp.lt.s32.totalorder %v143, 256
    %vm146 = vmand %vm144, %vm145
    %147 = vst.msk [vmem:[%s3] sm:$0x3] %vm146, %v142
    %v148 = vld [vmem:[%s4] sm:$0x3]
    %150 = vst [vmem:[#allocation1] ss:$2 sm:$0xff] %v112
    %v151 = vld.sshfl [vmem:[#allocation1] sm:$0xff pattern:$0x75316420]
    %v152 = vld.sshfl [vmem:[#allocation1 + $0x8] sm:$0xff pattern:$0x75316420]
    %v155 = vsel %vm121, %v151, 0.0
    %v156 = vrot.slane %v155, 4
    %v157 = vadd.f32 %v155, %v156
    %v158 = vrot.slane %v157, 2
    %v159 = vadd.f32 %v157, %v158
    %v160 = vrot.slane %v159, 1
    %v161 = vadd.f32 %v159, %v160
    %v162 = vsel %vm121, %v152, 0.0
    %v163 = vrot.slane %v162, 4
    %v164 = vadd.f32 %v162, %v163
    %v165 = vrot.slane %v164, 2
    %v166 = vadd.f32 %v164, %v165
    %v167 = vrot.slane %v166, 1
    %v168 = vadd.f32 %v166, %v167
    %v171 = vrot.slane %v168, 7
    %v172 = vsel %vm139, %v161, %v171
    %v174 = vadd.f32 %v148, %v172
    %175 = vst.msk [vmem:[%s4] sm:$0x3] %vm146, %v174
    // Predicated region
    $region26: #{kl_penalty.1} parent=1 // pred_check
      _
    $region27: #{kl_penalty.1} parent=1 // pred_check_branch
      %177 = sbr.rel (0) target = $region29
    $region28: #{kl_penalty.1} parent=1 // pred_region
      _
    $region29: #{kl_penalty.1} parent=1 // pred_fallthru
      _
    // Predicated region
    $region30: #{kl_penalty.1} parent=1 // pred_check
      _
    $region31: #{kl_penalty.1} parent=1 // pred_check_branch
      %179 = sbr.rel (0) target = $region33
    $region32: #{kl_penalty.1} parent=1 // pred_region
      _
    $region33: #{kl_penalty.1} parent=1 // pred_fallthru
      _
    // Predicated region
    $region34: #{kl_penalty.1} parent=1 // pred_check
      _
    $region35: #{kl_penalty.1} parent=1 // pred_check_branch
      %181 = sbr.rel (0) target = $region37
    $region36: #{kl_penalty.1} parent=1 // pred_region
      _
    $region37: #{kl_penalty.1} parent=1 // pred_fallthru
      _
    // Predicated region
    $region38: #{kl_penalty.1} parent=1 // pred_check
      _
    $region39: #{kl_penalty.1} parent=1 // pred_check_branch
      %183 = sbr.rel (0) target = $region41
    $region40: #{kl_penalty.1} parent=1 // pred_region
      _
    $region41: #{kl_penalty.1} parent=1 // pred_fallthru
      _
    %184 = vsyncpa [#allocation3], 1
    %185 = vsyncpa [#allocation5], 1

</llo_original>
